<compile_context>
chip_gen: v6e
topology: v6e:2x2x1
jax: 0.10.0
libtpu: 0.0.40
codegen_flags: <defaults>
</compile_context>

<pallas_src>
import functools

import jax
import jax.numpy as jnp
import numpy as np
from jax.experimental import pallas as pl
from jax.experimental.pallas import tpu as pltpu


# ----------------------------------------------------------------------------
# Pallas kernel: `step` GNNCell iterations for a tile of BT sessions.
# ----------------------------------------------------------------------------
def gnn_kernel(a_in_ref, a_out_ref, h_ref,
               w_fused_ref, b_fused_ref,     # [E,5E]=[edge_in|edge_out|w_hh], [1,5E]
               w_ih_top_ref, w_ih_bot_ref,   # w_ih^T split: [E,3E] + [E,3E]
               b_ih_ref,                     # effective GRU input bias [1,3E]
               hy_ref, *, step):
    a_in = a_in_ref[...]                      # [BT, L, L]
    a_out = a_out_ref[...]                    # [BT, L, L]
    h = h_ref[...].astype(jnp.float32)        # [BT, L, E]
    BT, L, E = h.shape

    w_fused = w_fused_ref[...]                # [E, 5E]
    b_fused = b_fused_ref[...]                # [1, 5E]
    w_top = w_ih_top_ref[...]                 # [E, 3E]
    w_bot = w_ih_bot_ref[...]                 # [E, 3E]
    b_ih = b_ih_ref[...]                      # [1, 3E]

    # `step` is small and static -> unrolled Python loop (LLO sees everything).
    for _ in range(step):
        h_flat = h.reshape(BT * L, E)

        # One fused node-wise projection: [BT*L, E] @ [E, 5E].
        fused = jnp.dot(h_flat, w_fused,
                        preferred_element_type=jnp.float32) + b_fused
        h_in = fused[:, :E].reshape(BT, L, E)
        h_out = fused[:, E:2 * E].reshape(BT, L, E)
        gh = fused[:, 2 * E:]                 # [BT*L, 3E]  (h @ w_hh^T + b_hh)

        # Per-session adjacency matmuls (batched over BT).
        input_in = jnp.einsum('blm,bme->ble', a_in, h_in,
                              preferred_element_type=jnp.float32)
        input_out = jnp.einsum('blm,bme->ble', a_out, h_out,
                               preferred_element_type=jnp.float32)

        # gi = [input_in | input_out] @ w_ih^T + b_ih  (concat eliminated;
        # b_iah / b_ioh already folded into b_ih in the wrapper).
        gi = (jnp.dot(input_in.reshape(BT * L, E), w_top,
                      preferred_element_type=jnp.float32)
              + jnp.dot(input_out.reshape(BT * L, E), w_bot,
                        preferred_element_type=jnp.float32)
              + b_ih)                          # [BT*L, 3E]

        i_r, i_i, i_n = gi[:, :E], gi[:, E:2 * E], gi[:, 2 * E:]
        h_r, h_i, h_n = gh[:, :E], gh[:, E:2 * E], gh[:, 2 * E:]

        reset_gate = jax.nn.sigmoid(i_r + h_r)
        input_gate = jax.nn.sigmoid(i_i + h_i)
        new_gate = jnp.tanh(i_n + reset_gate * h_n)
        hy = (1.0 - input_gate) * h_flat + input_gate * new_gate
        h = hy.reshape(BT, L, E)

    hy_ref[...] = h.astype(hy_ref.dtype)


# ----------------------------------------------------------------------------
# Wrapper: weight fusion / bias folding + pallas_call over batch tiles.
# ----------------------------------------------------------------------------
def _full_spec(shape):
    # whole-array block, same block for every grid index
    return pl.BlockSpec(shape, lambda b: tuple(0 for _ in shape))


def _pick_bt(B, max_bt=8):
    """Largest divisor of B <= max_bt; prefer keeping >= 2 grid steps (v7x)."""
    divs = [d for d in range(1, min(B, max_bt) + 1) if B % d == 0]
    pref = [d for d in divs if B // d >= 2]
    return max(pref) if pref else max(divs)


@functools.partial(jax.jit, static_argnames=("step", "block_b"))
def gnn_forward(A, hidden, params, step=1, block_b=None):
    B, L, E = hidden.shape
    assert A.shape == (B, L, 2 * L)
    BT = block_b if block_b is not None else _pick_bt(B)
    assert B % BT == 0
    grid_b = B // BT

    # Split adjacency once in the wrapper (avoids in-kernel lane-offset slice).
    a_in = A[:, :, :L]
    a_out = A[:, :, L:2 * L]

    # Pre-transpose torch-style [out, in] weights so the kernel does x @ W.
    w_ein_t = params["w_edge_in"].T           # [E, E]
    w_eout_t = params["w_edge_out"].T         # [E, E]
    w_hh_t = params["w_hh"].T                 # [E, 3E]
    w_ih_t = params["w_ih"].T                 # [2E, 3E]
    w_ih_top = w_ih_t[:E]                     # [E, 3E]  (multiplies input_in)
    w_ih_bot = w_ih_t[E:]                     # [E, 3E]  (multiplies input_out)

    # Fuse every matmul whose LHS is `hidden` into a single [E, 5E] weight.
    w_fused = jnp.concatenate([w_ein_t, w_eout_t, w_hh_t], axis=1)   # [E, 5E]
    b_fused = jnp.concatenate(
        [params["b_edge_in"], params["b_edge_out"], params["b_hh"]]
    ).reshape(1, 5 * E)

    # Fold graph biases into the GRU input bias (exact: gi is linear in them).
    b_ih_eff = (params["b_iah"] @ w_ih_top
                + params["b_ioh"] @ w_ih_bot
                + params["b_ih"]).reshape(1, 3 * E)

    in_specs = [
        pl.BlockSpec((BT, L, L), lambda b: (b, 0, 0)),       # A_in
        pl.BlockSpec((BT, L, L), lambda b: (b, 0, 0)),       # A_out
        pl.BlockSpec((BT, L, E), lambda b: (b, 0, 0)),       # hidden
        _full_spec((E, 5 * E)), _full_spec((1, 5 * E)),      # fused W, b
        _full_spec((E, 3 * E)), _full_spec((E, 3 * E)),      # w_ih top/bot
        _full_spec((1, 3 * E)),                              # b_ih (effective)
    ]
    out_spec = pl.BlockSpec((BT, L, E), lambda b: (b, 0, 0))

    return pl.pallas_call(
        functools.partial(gnn_kernel, step=step),
        out_shape=jax.ShapeDtypeStruct((B, L, E), hidden.dtype),
        grid=(grid_b,),
        in_specs=in_specs,
        out_specs=out_spec,
        compiler_params=pltpu.CompilerParams(
            dimension_semantics=("parallel",)),
    )(a_in, a_out, hidden,
      w_fused, b_fused, w_ih_top, w_ih_bot, b_ih_eff)


# ----------------------------------------------------------------------------
# Pure-JAX reference (mirrors the PyTorch code) for a correctness check.
# ----------------------------------------------------------------------------
def gnn_forward_ref(A, hidden, params, step=1):
    L = A.shape[1]
    for _ in range(step):
        h_in = hidden @ params["w_edge_in"].T + params["b_edge_in"]
        h_out = hidden @ params["w_edge_out"].T + params["b_edge_out"]
        input_in = jnp.matmul(A[:, :, :L], h_in) + params["b_iah"]
        input_out = jnp.matmul(A[:, :, L:2 * L], h_out) + params["b_ioh"]
        inputs = jnp.concatenate([input_in, input_out], axis=2)
        gi = inputs @ params["w_ih"].T + params["b_ih"]
        gh = hidden @ params["w_hh"].T + params["b_hh"]
        i_r, i_i, i_n = jnp.split(gi, 3, axis=2)
        h_r, h_i, h_n = jnp.split(gh, 3, axis=2)
        reset_gate = jax.nn.sigmoid(i_r + h_r)
        input_gate = jax.nn.sigmoid(i_i + h_i)
        new_gate = jnp.tanh(i_n + reset_gate * h_n)
        hidden = (1.0 - input_gate) * hidden + input_gate * new_gate
    return hidden


def init_params(key, embedding_size):
    E = embedding_size
    gate, inp = 3 * E, 2 * E
    stdv = 1.0 / np.sqrt(E)
    ks = jax.random.split(key, 10)
    u = lambda k, shape: jax.random.uniform(
        k, shape, jnp.float32, minval=-stdv, maxval=stdv)
    return {
        "w_ih": u(ks[0], (gate, inp)),
        "w_hh": u(ks[1], (gate, E)),
        "b_ih": u(ks[2], (gate,)),
        "b_hh": u(ks[3], (gate,)),
        "b_iah": u(ks[4], (E,)),
        "b_ioh": u(ks[5], (E,)),
        "w_edge_in": u(ks[6], (E, E)),
        "b_edge_in": u(ks[7], (E,)),
        "w_edge_out": u(ks[8], (E, E)),
        "b_edge_out": u(ks[9], (E,)),
    }


if __name__ == "__main__":
    B, L, E = 2, 8, 32      # batch, max_session_len, embedding_size

    key = jax.random.PRNGKey(0)
    k_p, k_a, k_h = jax.random.split(key, 3)

    params = init_params(k_p, E)
    # A mimics normalized adjacency values in [0, 1]
    A = jax.random.uniform(k_a, (B, L, 2 * L), jnp.float32)
    hidden = jax.random.normal(k_h, (B, L, E), jnp.float32)

    # step=1 matches the module default; step=3 exercises the in-kernel loop.
    for step in (1, 3):
        out = jax.block_until_ready(gnn_forward(A, hidden, params, step=step))
        ref = gnn_forward_ref(A, hidden, params, step=step)
        np.testing.assert_allclose(np.asarray(out), np.asarray(ref),
                                   rtol=1e-4, atol=1e-4)

    print("KERNEL_OK")
</pallas_src>

<mosaic_0001>
module attributes {stable_mosaic.version = 11 : i64} {
  func.func @gnn_kernel(%arg0: i32, %arg1: memref<1x8x8xf32, #tpu.memory_space<vmem>>, %arg2: memref<1x8x8xf32, #tpu.memory_space<vmem>>, %arg3: memref<1x8x32xf32, #tpu.memory_space<vmem>>, %arg4: memref<32x160xf32, #tpu.memory_space<vmem>>, %arg5: memref<1x160xf32, #tpu.memory_space<vmem>>, %arg6: memref<32x96xf32, #tpu.memory_space<vmem>>, %arg7: memref<32x96xf32, #tpu.memory_space<vmem>>, %arg8: memref<1x96xf32, #tpu.memory_space<vmem>>, %arg9: memref<1x8x32xf32, #tpu.memory_space<vmem>>) attributes {dimension_semantics = [#tpu.dimension_semantics<parallel>], iteration_bounds = array<i64: 2>, scalar_prefetch = 0 : i64, scratch_operands = 0 : i64, tpu.core_type = #tpu.core_type<tc>, window_params = [{transform_indices = @transform_0, window_bounds = array<i64: 1, 8, 8>}, {transform_indices = @transform_1, window_bounds = array<i64: 1, 8, 8>}, {transform_indices = @transform_2, window_bounds = array<i64: 1, 8, 32>}, {pipeline_mode = #tpu.pipeline_mode<synchronous>, transform_indices = @transform_3, window_bounds = array<i64: 32, 160>}, {pipeline_mode = #tpu.pipeline_mode<synchronous>, transform_indices = @transform_4, window_bounds = array<i64: 1, 160>}, {pipeline_mode = #tpu.pipeline_mode<synchronous>, transform_indices = @transform_5, window_bounds = array<i64: 32, 96>}, {pipeline_mode = #tpu.pipeline_mode<synchronous>, transform_indices = @transform_6, window_bounds = array<i64: 32, 96>}, {pipeline_mode = #tpu.pipeline_mode<synchronous>, transform_indices = @transform_7, window_bounds = array<i64: 1, 96>}, {transform_indices = @transform_8, window_bounds = array<i64: 1, 8, 32>}]} {
    %c0 = arith.constant 0 : index
    %c0_0 = arith.constant 0 : index
    %c0_1 = arith.constant 0 : index
    %0 = vector.load %arg1[%c0, %c0_0, %c0_1] : memref<1x8x8xf32, #tpu.memory_space<vmem>>, vector<1x8x8xf32>
    %c0_2 = arith.constant 0 : index
    %c0_3 = arith.constant 0 : index
    %c0_4 = arith.constant 0 : index
    %1 = vector.load %arg2[%c0_2, %c0_3, %c0_4] : memref<1x8x8xf32, #tpu.memory_space<vmem>>, vector<1x8x8xf32>
    %c0_5 = arith.constant 0 : index
    %c0_6 = arith.constant 0 : index
    %c0_7 = arith.constant 0 : index
    %2 = vector.load %arg3[%c0_5, %c0_6, %c0_7] : memref<1x8x32xf32, #tpu.memory_space<vmem>>, vector<1x8x32xf32>
    %c0_8 = arith.constant 0 : index
    %c0_9 = arith.constant 0 : index
    %3 = vector.load %arg4[%c0_8, %c0_9] : memref<32x160xf32, #tpu.memory_space<vmem>>, vector<32x160xf32>
    %c0_10 = arith.constant 0 : index
    %c0_11 = arith.constant 0 : index
    %4 = vector.load %arg5[%c0_10, %c0_11] : memref<1x160xf32, #tpu.memory_space<vmem>>, vector<1x160xf32>
    %c0_12 = arith.constant 0 : index
    %c0_13 = arith.constant 0 : index
    %5 = vector.load %arg6[%c0_12, %c0_13] : memref<32x96xf32, #tpu.memory_space<vmem>>, vector<32x96xf32>
    %c0_14 = arith.constant 0 : index
    %c0_15 = arith.constant 0 : index
    %6 = vector.load %arg7[%c0_14, %c0_15] : memref<32x96xf32, #tpu.memory_space<vmem>>, vector<32x96xf32>
    %c0_16 = arith.constant 0 : index
    %c0_17 = arith.constant 0 : index
    %7 = vector.load %arg8[%c0_16, %c0_17] : memref<1x96xf32, #tpu.memory_space<vmem>>, vector<1x96xf32>
    %8 = vector.shape_cast %2 : vector<1x8x32xf32> to vector<8x32xf32>
    %cst = arith.constant dense<0.000000e+00> : vector<8x160xf32>
    %9 = tpu.matmul %8, %3, %cst {dimension_numbers = #tpu.dot_dimension_numbers<[1], [0], [0], [1], [0, 0, 1, 1], [], []>} : vector<8x32xf32>, vector<32x160xf32>, vector<8x160xf32> -> vector<8x160xf32>
    %10 = vector.broadcast %4 : vector<1x160xf32> to vector<8x160xf32>
    %11 = arith.addf %9, %10 : vector<8x160xf32>
    %12 = vector.extract_strided_slice %11 {offsets = [0, 0], sizes = [8, 32], strides = [1, 1]} : vector<8x160xf32> to vector<8x32xf32>
    %13 = vector.shape_cast %12 : vector<8x32xf32> to vector<1x8x32xf32>
    %14 = vector.extract_strided_slice %11 {offsets = [0, 32], sizes = [8, 32], strides = [1, 1]} : vector<8x160xf32> to vector<8x32xf32>
    %15 = vector.shape_cast %14 : vector<8x32xf32> to vector<1x8x32xf32>
    %16 = vector.extract_strided_slice %11 {offsets = [0, 64], sizes = [8, 96], strides = [1, 1]} : vector<8x160xf32> to vector<8x96xf32>
    "tpu.trace_start"() <{level = 10 : i32, message = "blm,bme->ble"}> : () -> ()
    %cst_18 = arith.constant dense<0.000000e+00> : vector<1x8x32xf32>
    %17 = tpu.matmul %0, %13, %cst_18 {dimension_numbers = #tpu.dot_dimension_numbers<[2], [1], [1], [2], [0, 0, 0, 1, 1, 2], [0], [0]>} : vector<1x8x8xf32>, vector<1x8x32xf32>, vector<1x8x32xf32> -> vector<1x8x32xf32>
    %cst_19 = arith.constant dense<0.000000e+00> : vector<1x8x32xf32>
    %18 = tpu.matmul %1, %15, %cst_19 {dimension_numbers = #tpu.dot_dimension_numbers<[2], [1], [1], [2], [0, 0, 0, 1, 1, 2], [0], [0]>} : vector<1x8x8xf32>, vector<1x8x32xf32>, vector<1x8x32xf32> -> vector<1x8x32xf32>
    "tpu.trace_stop"() : () -> ()
    %19 = vector.shape_cast %17 : vector<1x8x32xf32> to vector<8x32xf32>
    %cst_20 = arith.constant dense<0.000000e+00> : vector<8x96xf32>
    %20 = tpu.matmul %19, %5, %cst_20 {dimension_numbers = #tpu.dot_dimension_numbers<[1], [0], [0], [1], [0, 0, 1, 1], [], []>} : vector<8x32xf32>, vector<32x96xf32>, vector<8x96xf32> -> vector<8x96xf32>
    %21 = vector.shape_cast %18 : vector<1x8x32xf32> to vector<8x32xf32>
    %cst_21 = arith.constant dense<0.000000e+00> : vector<8x96xf32>
    %22 = tpu.matmul %21, %6, %cst_21 {dimension_numbers = #tpu.dot_dimension_numbers<[1], [0], [0], [1], [0, 0, 1, 1], [], []>} : vector<8x32xf32>, vector<32x96xf32>, vector<8x96xf32> -> vector<8x96xf32>
    %23 = arith.addf %20, %22 : vector<8x96xf32>
    %24 = vector.broadcast %7 : vector<1x96xf32> to vector<8x96xf32>
    %25 = arith.addf %23, %24 : vector<8x96xf32>
    %26 = vector.extract_strided_slice %25 {offsets = [0, 0], sizes = [8, 32], strides = [1, 1]} : vector<8x96xf32> to vector<8x32xf32>
    %27 = vector.extract_strided_slice %25 {offsets = [0, 32], sizes = [8, 32], strides = [1, 1]} : vector<8x96xf32> to vector<8x32xf32>
    %28 = vector.extract_strided_slice %25 {offsets = [0, 64], sizes = [8, 32], strides = [1, 1]} : vector<8x96xf32> to vector<8x32xf32>
    %29 = vector.extract_strided_slice %16 {offsets = [0, 0], sizes = [8, 32], strides = [1, 1]} : vector<8x96xf32> to vector<8x32xf32>
    %30 = vector.extract_strided_slice %16 {offsets = [0, 32], sizes = [8, 32], strides = [1, 1]} : vector<8x96xf32> to vector<8x32xf32>
    %31 = vector.extract_strided_slice %16 {offsets = [0, 64], sizes = [8, 32], strides = [1, 1]} : vector<8x96xf32> to vector<8x32xf32>
    %32 = arith.addf %26, %29 : vector<8x32xf32>
    %33 = arith.negf %32 : vector<8x32xf32>
    %34 = math.exp %33 : vector<8x32xf32>
    %cst_22 = arith.constant 1.000000e+00 : f32
    %35 = vector.broadcast %cst_22 : f32 to vector<8x32xf32>
    %36 = arith.addf %35, %34 : vector<8x32xf32>
    %37 = arith.divf %35, %36 : vector<8x32xf32>
    %38 = arith.addf %27, %30 : vector<8x32xf32>
    %39 = arith.negf %38 : vector<8x32xf32>
    %40 = math.exp %39 : vector<8x32xf32>
    %cst_23 = arith.constant 1.000000e+00 : f32
    %41 = vector.broadcast %cst_23 : f32 to vector<8x32xf32>
    %42 = arith.addf %41, %40 : vector<8x32xf32>
    %43 = arith.divf %41, %42 : vector<8x32xf32>
    %44 = arith.mulf %37, %31 : vector<8x32xf32>
    %45 = arith.addf %28, %44 : vector<8x32xf32>
    %46 = math.tanh %45 : vector<8x32xf32>
    %cst_24 = arith.constant 1.000000e+00 : f32
    %47 = vector.broadcast %cst_24 : f32 to vector<8x32xf32>
    %48 = arith.subf %47, %43 : vector<8x32xf32>
    %49 = arith.mulf %48, %8 : vector<8x32xf32>
    %50 = arith.mulf %43, %46 : vector<8x32xf32>
    %51 = arith.addf %49, %50 : vector<8x32xf32>
    %52 = vector.shape_cast %51 : vector<8x32xf32> to vector<1x8x32xf32>
    %c0_25 = arith.constant 0 : index
    %c0_26 = arith.constant 0 : index
    %c0_27 = arith.constant 0 : index
    %53 = vector.load %arg9[%c0_25, %c0_26, %c0_27] : memref<1x8x32xf32, #tpu.memory_space<vmem>>, vector<1x8x32xf32>
    tpu.vector_store %arg9[%c0_25, %c0_26, %c0_27], %52 {strides = array<i32>} : memref<1x8x32xf32, #tpu.memory_space<vmem>>, vector<1x8x32xf32>,
    return
  }
  func.func @transform_0(%arg0: i32) -> (i32, i32, i32) {
    %c0_i32 = arith.constant 0 : i32
    %c0_i32_0 = arith.constant 0 : i32
    %c0_i32_1 = arith.constant 0 : i32
    return %arg0, %c0_i32, %c0_i32_0 : i32, i32, i32
  }
  func.func @transform_1(%arg0: i32) -> (i32, i32, i32) {
    %c0_i32 = arith.constant 0 : i32
    %c0_i32_0 = arith.constant 0 : i32
    %c0_i32_1 = arith.constant 0 : i32
    return %arg0, %c0_i32, %c0_i32_0 : i32, i32, i32
  }
  func.func @transform_2(%arg0: i32) -> (i32, i32, i32) {
    %c0_i32 = arith.constant 0 : i32
    %c0_i32_0 = arith.constant 0 : i32
    %c0_i32_1 = arith.constant 0 : i32
    return %arg0, %c0_i32, %c0_i32_0 : i32, i32, i32
  }
  func.func @transform_3(%arg0: i32) -> (i32, i32) {
    %c0_i32 = arith.constant 0 : i32
    %c0_i32_0 = arith.constant 0 : i32
    %c0_i32_1 = arith.constant 0 : i32
    return %c0_i32, %c0_i32_0 : i32, i32
  }
  func.func @transform_4(%arg0: i32) -> (i32, i32) {
    %c0_i32 = arith.constant 0 : i32
    %c0_i32_0 = arith.constant 0 : i32
    %c0_i32_1 = arith.constant 0 : i32
    return %c0_i32, %c0_i32_0 : i32, i32
  }
  func.func @transform_5(%arg0: i32) -> (i32, i32) {
    %c0_i32 = arith.constant 0 : i32
    %c0_i32_0 = arith.constant 0 : i32
    %c0_i32_1 = arith.constant 0 : i32
    return %c0_i32, %c0_i32_0 : i32, i32
  }
  func.func @transform_6(%arg0: i32) -> (i32, i32) {
    %c0_i32 = arith.constant 0 : i32
    %c0_i32_0 = arith.constant 0 : i32
    %c0_i32_1 = arith.constant 0 : i32
    return %c0_i32, %c0_i32_0 : i32, i32
  }
  func.func @transform_7(%arg0: i32) -> (i32, i32) {
    %c0_i32 = arith.constant 0 : i32
    %c0_i32_0 = arith.constant 0 : i32
    %c0_i32_1 = arith.constant 0 : i32
    return %c0_i32, %c0_i32_0 : i32, i32
  }
  func.func @transform_8(%arg0: i32) -> (i32, i32, i32) {
    %c0_i32 = arith.constant 0 : i32
    %c0_i32_0 = arith.constant 0 : i32
    %c0_i32_1 = arith.constant 0 : i32
    return %arg0, %c0_i32, %c0_i32_0 : i32, i32, i32
  }
}

</mosaic_0001>

<llo_original>
// kernel: gnn_forward.1
$region0: #{gnn_forward.1}
  #allocation0 [shape = 'u32[]', space=smem, size = 0x4, offset = 0x4, fixed_abs, tag = 'smem constant byte address 0x4 - core index']
  #allocation1 [shape = 'u32[144,128]{1,0:T(1,128)}', space=vmem, size = 0x12000, scoped, tag = 'internal scratch']
  %s0 = inlined_call_operand.vmem [shape: f32[2,8,8], index: 0, kind: input, shape index: {}]
  %s1 = inlined_call_operand.vmem [shape: f32[2,8,8], index: 1, kind: input, shape index: {}]
  %s2 = inlined_call_operand.vmem [shape: f32[2,8,32], index: 2, kind: input, shape index: {}]
  %s3 = inlined_call_operand.vmem [shape: f32[32,160], index: 3, kind: input, shape index: {}]
  %s4 = inlined_call_operand.vmem [shape: f32[1,160], index: 4, kind: input, shape index: {}]
  %s5 = inlined_call_operand.vmem [shape: f32[32,96], index: 5, kind: input, shape index: {}]
  %s6 = inlined_call_operand.vmem [shape: f32[32,96], index: 6, kind: input, shape index: {}]
  %s7 = inlined_call_operand.vmem [shape: f32[1,96], index: 7, kind: input, shape index: {}]
  %s8 = inlined_call_operand.hbm [shape: f32[2,8,32], index: 8, kind: output, shape index: {}]
  %s9 = sld [smem:[#allocation0]]
  $region65: #{gnn_forward.1} parent=0
    _
  %s11 = ssub.s32 1, %s9
  %s12 = scalar_select 0, %s11, %s9
  $region1: #{gnn_forward.1} parent=0
    #allocation2 [shape = 'u8[8192]{0}', space=vmem, size = 0x2000, scoped, tag = 'output window, operand 0']
    #allocation3 [shape = 's32[2]{0}', space=sflag, size = 0x8, scoped, tag = 'scoped memory for gnn_forward.1']
    %13 = vsyncpa [#allocation3], 0
    %s14 = scalar_lea.sflag [#allocation3], 1
    %15 = vsyncpa %s14, 0
    loop: start=0, step=1, limit=4
    $region2: #{gnn_forward.1} parent=1 // loop_pre_header
      _
    $region3: #{gnn_forward.1} parent=1 // loop_header
      %s17 = sphi 0, %s21
      %p18 = scmp.ge.s32.totalorder %s17, 4
      %s27 = sphi 0, %s29
      %s30 = sphi 0, %s27
      %s31 = sphi 0, %s30
      %s47 = sphi 0, %s31
      %s53 = sphi 0, %s55
      %s56 = sphi 0, %s53
      %s57 = sphi 0, %s56
      %s73 = sphi 0, %s57
      %s79 = sphi 0, %s81
      %s82 = sphi 0, %s79
      %s83 = sphi 0, %s82
      %s99 = sphi 0, %s83
      %s103 = sphi 0, %s103
      %s105 = sphi 0, %s103
      %s106 = sphi 0, %s105
      %s120 = sphi 0, %s106
      %s124 = sphi 0, %s124
      %s126 = sphi 0, %s124
      %s127 = sphi 0, %s126
      %s141 = sphi 0, %s127
      %s145 = sphi 0, %s145
      %s147 = sphi 0, %s145
      %s148 = sphi 0, %s147
      %s162 = sphi 0, %s148
      %s166 = sphi 0, %s166
      %s168 = sphi 0, %s166
      %s169 = sphi 0, %s168
      %s183 = sphi 0, %s169
      %s187 = sphi 0, %s187
      %s189 = sphi 0, %s187
      %s190 = sphi 0, %s189
      %s204 = sphi 0, %s190
      %s210 = sphi 0, %s212
      %s213 = sphi 0, %s210
      %s214 = sphi 0, %s213
      %s230 = sphi 0, %s214
    $region4: #{gnn_forward.1} parent=1 // loop_header_branch
      %20 = sbr.rel (%p18) target = $region8
    $region5: #{gnn_forward.1} parent=1 // loop_body
      %s22 = ssub.s32 %s17, 1
      %s23 = ssub.s32 %s17, 2
      %s24 = sadd.s32 %s17, 1
      %s25 = ssub.s32 %s17, %s24
      %p26 = scmp.eq.s32.totalorder %s25, 0
      %s28 = sadd.s32 %s27, 1
      %s29 = scalar_select %p26, %s27, %s28
      %p32 = pneg %p26
      %p33 = scmp.eq.s32.totalorder %s17, 1
      %p34 = por %p32, %p33
      %p35 = scmp.ne.s32.totalorder %s27, %s30
      %p36 = scmp.eq.s32.totalorder %s17, 0
      %p37 = por %p35, %p36
      %p38 = scmp.ne.s32.totalorder %s27, %s30
      %p39 = scmp.eq.s32.totalorder %s22, 1
      %p40 = por %p38, %p39
      %p41 = scmp.ne.s32.totalorder %s30, %s31
      %p42 = scmp.eq.s32.totalorder %s22, 0
      %p43 = por %p41, %p42
      %p44 = scmp.ne.s32.totalorder %s30, %s31
      %p45 = scmp.eq.s32.totalorder %s23, 1
      %p46 = por %p44, %p45
      %p48 = scmp.ne.s32.totalorder %s31, %s47
      %p49 = scmp.eq.s32.totalorder %s23, 0
      %p50 = por %p48, %p49
      %s51 = ssub.s32 %s17, %s24
      %p52 = scmp.eq.s32.totalorder %s51, 0
      %s54 = sadd.s32 %s53, 1
      %s55 = scalar_select %p52, %s53, %s54
      %p58 = pneg %p52
      %p59 = scmp.eq.s32.totalorder %s17, 1
      %p60 = por %p58, %p59
      %p61 = scmp.ne.s32.totalorder %s53, %s56
      %p62 = scmp.eq.s32.totalorder %s17, 0
      %p63 = por %p61, %p62
      %p64 = scmp.ne.s32.totalorder %s53, %s56
      %p65 = scmp.eq.s32.totalorder %s22, 1
      %p66 = por %p64, %p65
      %p67 = scmp.ne.s32.totalorder %s56, %s57
      %p68 = scmp.eq.s32.totalorder %s22, 0
      %p69 = por %p67, %p68
      %p70 = scmp.ne.s32.totalorder %s56, %s57
      %p71 = scmp.eq.s32.totalorder %s23, 1
      %p72 = por %p70, %p71
      %p74 = scmp.ne.s32.totalorder %s57, %s73
      %p75 = scmp.eq.s32.totalorder %s23, 0
      %p76 = por %p74, %p75
      %s77 = ssub.s32 %s17, %s24
      %p78 = scmp.eq.s32.totalorder %s77, 0
      %s80 = sadd.s32 %s79, 1
      %s81 = scalar_select %p78, %s79, %s80
      %p84 = pneg %p78
      %p85 = scmp.eq.s32.totalorder %s17, 1
      %p86 = por %p84, %p85
      %p87 = scmp.ne.s32.totalorder %s79, %s82
      %p88 = scmp.eq.s32.totalorder %s17, 0
      %p89 = por %p87, %p88
      %p90 = scmp.ne.s32.totalorder %s79, %s82
      %p91 = scmp.eq.s32.totalorder %s22, 1
      %p92 = por %p90, %p91
      %p93 = scmp.ne.s32.totalorder %s82, %s83
      %p94 = scmp.eq.s32.totalorder %s22, 0
      %p95 = por %p93, %p94
      %p96 = scmp.ne.s32.totalorder %s82, %s83
      %p97 = scmp.eq.s32.totalorder %s23, 1
      %p98 = por %p96, %p97
      %p100 = scmp.ne.s32.totalorder %s83, %s99
      %p101 = scmp.eq.s32.totalorder %s23, 0
      %p102 = por %p100, %p101
      %s104 = sadd.s32 %s103, 1
      %p107 = scmp.eq.s32.totalorder %s17, 1
      %p108 = scmp.ne.s32.totalorder %s103, %s105
      %p109 = scmp.eq.s32.totalorder %s17, 0
      %p110 = por %p108, %p109
      %p111 = scmp.ne.s32.totalorder %s103, %s105
      %p112 = scmp.eq.s32.totalorder %s22, 1
      %p113 = por %p111, %p112
      %p114 = scmp.ne.s32.totalorder %s105, %s106
      %p115 = scmp.eq.s32.totalorder %s22, 0
      %p116 = por %p114, %p115
      %p117 = scmp.ne.s32.totalorder %s105, %s106
      %p118 = scmp.eq.s32.totalorder %s23, 1
      %p119 = por %p117, %p118
      %p121 = scmp.ne.s32.totalorder %s106, %s120
      %p122 = scmp.eq.s32.totalorder %s23, 0
      %p123 = por %p121, %p122
      %s125 = sadd.s32 %s124, 1
      %p128 = scmp.eq.s32.totalorder %s17, 1
      %p129 = scmp.ne.s32.totalorder %s124, %s126
      %p130 = scmp.eq.s32.totalorder %s17, 0
      %p131 = por %p129, %p130
      %p132 = scmp.ne.s32.totalorder %s124, %s126
      %p133 = scmp.eq.s32.totalorder %s22, 1
      %p134 = por %p132, %p133
      %p135 = scmp.ne.s32.totalorder %s126, %s127
      %p136 = scmp.eq.s32.totalorder %s22, 0
      %p137 = por %p135, %p136
      %p138 = scmp.ne.s32.totalorder %s126, %s127
      %p139 = scmp.eq.s32.totalorder %s23, 1
      %p140 = por %p138, %p139
      %p142 = scmp.ne.s32.totalorder %s127, %s141
      %p143 = scmp.eq.s32.totalorder %s23, 0
      %p144 = por %p142, %p143
      %s146 = sadd.s32 %s145, 1
      %p149 = scmp.eq.s32.totalorder %s17, 1
      %p150 = scmp.ne.s32.totalorder %s145, %s147
      %p151 = scmp.eq.s32.totalorder %s17, 0
      %p152 = por %p150, %p151
      %p153 = scmp.ne.s32.totalorder %s145, %s147
      %p154 = scmp.eq.s32.totalorder %s22, 1
      %p155 = por %p153, %p154
      %p156 = scmp.ne.s32.totalorder %s147, %s148
      %p157 = scmp.eq.s32.totalorder %s22, 0
      %p158 = por %p156, %p157
      %p159 = scmp.ne.s32.totalorder %s147, %s148
      %p160 = scmp.eq.s32.totalorder %s23, 1
      %p161 = por %p159, %p160
      %p163 = scmp.ne.s32.totalorder %s148, %s162
      %p164 = scmp.eq.s32.totalorder %s23, 0
      %p165 = por %p163, %p164
      %s167 = sadd.s32 %s166, 1
      %p170 = scmp.eq.s32.totalorder %s17, 1
      %p171 = scmp.ne.s32.totalorder %s166, %s168
      %p172 = scmp.eq.s32.totalorder %s17, 0
      %p173 = por %p171, %p172
      %p174 = scmp.ne.s32.totalorder %s166, %s168
      %p175 = scmp.eq.s32.totalorder %s22, 1
      %p176 = por %p174, %p175
      %p177 = scmp.ne.s32.totalorder %s168, %s169
      %p178 = scmp.eq.s32.totalorder %s22, 0
      %p179 = por %p177, %p178
      %p180 = scmp.ne.s32.totalorder %s168, %s169
      %p181 = scmp.eq.s32.totalorder %s23, 1
      %p182 = por %p180, %p181
      %p184 = scmp.ne.s32.totalorder %s169, %s183
      %p185 = scmp.eq.s32.totalorder %s23, 0
      %p186 = por %p184, %p185
      %s188 = sadd.s32 %s187, 1
      %p191 = scmp.eq.s32.totalorder %s17, 1
      %p192 = scmp.ne.s32.totalorder %s187, %s189
      %p193 = scmp.eq.s32.totalorder %s17, 0
      %p194 = por %p192, %p193
      %p195 = scmp.ne.s32.totalorder %s187, %s189
      %p196 = scmp.eq.s32.totalorder %s22, 1
      %p197 = por %p195, %p196
      %p198 = scmp.ne.s32.totalorder %s189, %s190
      %p199 = scmp.eq.s32.totalorder %s22, 0
      %p200 = por %p198, %p199
      %p201 = scmp.ne.s32.totalorder %s189, %s190
      %p202 = scmp.eq.s32.totalorder %s23, 1
      %p203 = por %p201, %p202
      %p205 = scmp.ne.s32.totalorder %s190, %s204
      %p206 = scmp.eq.s32.totalorder %s23, 0
      %p207 = por %p205, %p206
      %s208 = ssub.s32 %s17, %s24
      %p209 = scmp.eq.s32.totalorder %s208, 0
      %s211 = sadd.s32 %s210, 1
      %s212 = scalar_select %p209, %s210, %s211
      %p215 = pneg %p209
      %p216 = scmp.eq.s32.totalorder %s17, 1
      %p217 = por %p215, %p216
      %p218 = scmp.ne.s32.totalorder %s210, %s213
      %p219 = scmp.eq.s32.totalorder %s17, 0
      %p220 = por %p218, %p219
      %p221 = scmp.ne.s32.totalorder %s210, %s213
      %p222 = scmp.eq.s32.totalorder %s22, 1
      %p223 = por %p221, %p222
      %p224 = scmp.ne.s32.totalorder %s213, %s214
      %p225 = scmp.eq.s32.totalorder %s22, 0
      %p226 = por %p224, %p225
      %p227 = scmp.ne.s32.totalorder %s213, %s214
      %p228 = scmp.eq.s32.totalorder %s23, 1
      %p229 = por %p227, %p228
      %p231 = scmp.ne.s32.totalorder %s214, %s230
      %p232 = scmp.eq.s32.totalorder %s23, 0
      %p233 = por %p231, %p232
      %p234 = scmp.le.s32.totalorder 1, %s17
      %p235 = scmp.lt.s32.totalorder %s17, 3
      %p236 = pnand %p234, %p235
      %p237 = pneg %p236
      // Predicated region
      $region9: #{gnn_forward.1} parent=5 // pred_check
        _
      $region10: #{gnn_forward.1} parent=5 // pred_check_branch
        %239 = sbr.rel (%p236) target = $region12
      $region11: #{gnn_forward.1} parent=5 // pred_region
        %s240 = ssub.s32 %s17, 1
        // Predicated region
        $region13: #{gnn_forward.1} parent=11 // pred_check
          %p241 = pneg %p116
        $region14: #{gnn_forward.1} parent=11 // pred_check_branch
          %243 = sbr.rel (%p241) target = $region16
        $region15: #{gnn_forward.1} parent=11 // pred_region
          _
        $region16: #{gnn_forward.1} parent=11 // pred_fallthru
          _
        // Predicated region
        $region17: #{gnn_forward.1} parent=11 // pred_check
          %p244 = pneg %p137
        $region18: #{gnn_forward.1} parent=11 // pred_check_branch
          %246 = sbr.rel (%p244) target = $region20
        $region19: #{gnn_forward.1} parent=11 // pred_region
          _
        $region20: #{gnn_forward.1} parent=11 // pred_fallthru
          _
        // Predicated region
        $region21: #{gnn_forward.1} parent=11 // pred_check
          %p247 = pneg %p158
        $region22: #{gnn_forward.1} parent=11 // pred_check_branch
          %249 = sbr.rel (%p247) target = $region24
        $region23: #{gnn_forward.1} parent=11 // pred_region
          _
        $region24: #{gnn_forward.1} parent=11 // pred_fallthru
          _
        // Predicated region
        $region25: #{gnn_forward.1} parent=11 // pred_check
          %p250 = pneg %p179
        $region26: #{gnn_forward.1} parent=11 // pred_check_branch
          %252 = sbr.rel (%p250) target = $region28
        $region27: #{gnn_forward.1} parent=11 // pred_region
          _
        $region28: #{gnn_forward.1} parent=11 // pred_fallthru
          _
        // Predicated region
        $region29: #{gnn_forward.1} parent=11 // pred_check
          %p253 = pneg %p200
        $region30: #{gnn_forward.1} parent=11 // pred_check_branch
          %255 = sbr.rel (%p253) target = $region32
        $region31: #{gnn_forward.1} parent=11 // pred_region
          _
        $region32: #{gnn_forward.1} parent=11 // pred_fallthru
          _
      $region12: #{gnn_forward.1} parent=5 // pred_fallthru
        _
      %p256 = scmp.lt.s32.totalorder %s17, 2
      // Predicated region
      $region33: #{gnn_forward.1} parent=5 // pred_check
        %p257 = pneg %p256
      $region34: #{gnn_forward.1} parent=5 // pred_check_branch
        %259 = sbr.rel (%p257) target = $region36
      $region35: #{gnn_forward.1} parent=5 // pred_region
        // Predicated region
        $region37: #{gnn_forward.1} parent=35 // pred_check
          %p260 = pneg %p37
        $region38: #{gnn_forward.1} parent=35 // pred_check_branch
          %262 = sbr.rel (%p260) target = $region40
        $region39: #{gnn_forward.1} parent=35 // pred_region
          %p263 = scmp.lt.s32.totalorder %s17, 1
          %s264 = scalar_select %p263, %s17, 1
          %s265 = smul.addr %s264, 8
          %s266 = scalar_lea.vmem %s0, %s265
        $region40: #{gnn_forward.1} parent=35 // pred_fallthru
          _
        // Predicated region
        $region41: #{gnn_forward.1} parent=35 // pred_check
          %p267 = pneg %p63
        $region42: #{gnn_forward.1} parent=35 // pred_check_branch
          %269 = sbr.rel (%p267) target = $region44
        $region43: #{gnn_forward.1} parent=35 // pred_region
          %p270 = scmp.lt.s32.totalorder %s17, 1
          %s271 = scalar_select %p270, %s17, 1
          %s272 = smul.addr %s271, 8
          %s273 = scalar_lea.vmem %s1, %s272
        $region44: #{gnn_forward.1} parent=35 // pred_fallthru
          _
        // Predicated region
        $region45: #{gnn_forward.1} parent=35 // pred_check
          %p274 = pneg %p89
        $region46: #{gnn_forward.1} parent=35 // pred_check_branch
          %276 = sbr.rel (%p274) target = $region48
        $region47: #{gnn_forward.1} parent=35 // pred_region
          %p277 = scmp.lt.s32.totalorder %s17, 1
          %s278 = scalar_select %p277, %s17, 1
          %s279 = smul.addr %s278, 8
          %s280 = scalar_lea.vmem %s2, %s279
        $region48: #{gnn_forward.1} parent=35 // pred_fallthru
          _
      $region36: #{gnn_forward.1} parent=5 // pred_fallthru
        _
      %p281 = scmp.le.s32.totalorder 1, %s17
      %p282 = scmp.lt.s32.totalorder %s17, 3
      %p283 = pnand %p281, %p282
      %p284 = pneg %p283
      // Predicated region
      $region49: #{gnn_forward.1} parent=5 // pred_check
        _
      $region50: #{gnn_forward.1} parent=5 // pred_check_branch
        %286 = sbr.rel (%p283) target = $region52
      $region51: #{gnn_forward.1} parent=5 // pred_region
        %s287 = ssub.s32 %s17, 1
        %p288 = scmp.lt.s32.totalorder %s22, 1
        %s289 = scalar_select %p288, %s22, 1
        %s290 = smul.addr %s289, 8
        %s291 = scalar_lea.vmem %s0, %s290
        %p292 = pneg %p43
        %p293 = pneg %p40
        %p294 = scmp.lt.s32.totalorder %s22, 1
        %s295 = scalar_select %p294, %s22, 1
        %s296 = smul.addr %s295, 8
        %s297 = scalar_lea.vmem %s1, %s296
        %p298 = pneg %p69
        %p299 = pneg %p66
        %p300 = scmp.lt.s32.totalorder %s22, 1
        %s301 = scalar_select %p300, %s22, 1
        %s302 = smul.addr %s301, 8
        %s303 = scalar_lea.vmem %s2, %s302
        %p304 = pneg %p95
        %p305 = pneg %p92
        %p306 = pneg %p116
        %p307 = pneg %p113
        %p308 = pneg %p137
        %p309 = pneg %p134
        %p310 = pneg %p158
        %p311 = pneg %p155
        %p312 = pneg %p179
        %p313 = pneg %p176
        %p314 = pneg %p200
        %p315 = pneg %p197
        %p316 = pneg %p226
        %p317 = pneg %p223
        %s318 = sand.u32 %s213, 1
        %s319 = scalar_lea.sflag [#allocation3], %s318
        %s320 = sand.u32 %s213, 1
        %s321 = smul.addr %s320, 8
        %s322 = scalar_lea.vmem [#allocation2], %s321
        %p323 = scmp.lt.s32.totalorder %s22, 1
        %s324 = scalar_select %p323, %s22, 1
        %s325 = smul.addr %s324, 8
        %s326 = scalar_lea.vmem %s0, %s325
        %p327 = scmp.lt.s32.totalorder %s22, 1
        %s328 = scalar_select %p327, %s22, 1
        %s329 = smul.addr %s328, 8
        %s330 = scalar_lea.vmem %s1, %s329
        %p331 = scmp.lt.s32.totalorder %s22, 1
        %s332 = scalar_select %p331, %s22, 1
        %s333 = smul.addr %s332, 8
        %s334 = scalar_lea.vmem %s2, %s333
        %v335 = vld [vmem:[%s326] sm:$0xff]
        %v336 = vld [vmem:[%s330] sm:$0xff]
        %v337 = vld [vmem:[%s334] sm:$0xff]
        %v338 = vld [vmem:[%s3] sm:$0xff]
        %v339 = vld [vmem:[%s3 + $0x8] sm:$0xff]
        %v340 = vld [vmem:[%s3 + $0x10] sm:$0xff]
        %v341 = vld [vmem:[%s3 + $0x18] sm:$0xff]
        %v342 = vld [vmem:[%s3 + $0x20] sm:$0xff]
        %v343 = vld [vmem:[%s3 + $0x28] sm:$0xff]
        %v344 = vld [vmem:[%s3 + $0x30] sm:$0xff]
        %v345 = vld [vmem:[%s3 + $0x38] sm:$0xff]
        %v346 = vld [vmem:[%s4] sm:$0x3]
        %v347 = vld [vmem:[%s5] sm:$0xff]
        %v348 = vld [vmem:[%s5 + $0x8] sm:$0xff]
        %v349 = vld [vmem:[%s5 + $0x10] sm:$0xff]
        %v350 = vld [vmem:[%s5 + $0x18] sm:$0xff]
        %v351 = vld [vmem:[%s6] sm:$0xff]
        %v352 = vld [vmem:[%s6 + $0x8] sm:$0xff]
        %v353 = vld [vmem:[%s6 + $0x10] sm:$0xff]
        %v354 = vld [vmem:[%s6 + $0x18] sm:$0xff]
        %v355 = vld [vmem:[%s7] sm:$0x1]
        %v357 = vlaneseq
        %v358 = vshrl.u32 %v357, 7
        %v359 = vsub.s32 0, %v358
        %v360 = vrot.slane %v346, %v359
        %v361 = vlaneseq
        %v362 = vshrl.u32 %v361, 7
        %v363 = vsub.s32 1, %v362
        %v364 = vrot.slane %v346, %v363
        %vm367 = vcmask 261120
        %v369 = vsel %vm367, %v337, 0
        %371 = vmatprep.subr.mxu0 0.0
        %372 = vmatpush1.msra.mxu0 0.0
        %373 = vmatprep.subr.mxu0 0.0
        %374 = vmatpush1.msra.mxu0 0.0
        %375 = vmatprep.subr.mxu0 0.0
        %376 = vmatpush1.msra.mxu0 0.0
        %377 = vmatprep.subr.mxu0 0.0
        %378 = vmatpush1.msra.mxu0 0.0
        %379 = vmatprep.subr.mxu0 0.0
        %380 = vmatpush1.msra.mxu0 0.0
        %381 = vmatprep.subr.mxu0 0.0
        %382 = vmatpush1.msra.mxu0 0.0
        %383 = vmatprep.subr.mxu0 0.0
        %384 = vmatpush1.msra.mxu0 0.0
        %385 = vmatprep.subr.mxu0 0.0
        %386 = vmatpush1.msra.mxu0 0.0
        %387 = vmatprep.subr.mxu0 0.0
        %388 = vmatpush1.msra.mxu0 0.0
        %389 = vmatprep.subr.mxu0 0.0
        %390 = vmatpush1.msra.mxu0 0.0
        %391 = vmatprep.subr.mxu0 0.0
        %392 = vmatpush1.msra.mxu0 0.0
        %393 = vmatprep.subr.mxu0 0.0
        %394 = vmatpush1.msra.mxu0 0.0
        %395 = vmatprep.subr.mxu0 %v345
        %396 = vmatpush1.msra.mxu0 %v344
        %397 = vmatprep.subr.mxu0 %v343
        %398 = vmatpush1.msra.mxu0 %v342
        %399 = vmatprep.subr.mxu0 %v341
        %400 = vmatpush1.msra.mxu0 %v340
        %401 = vmatprep.subr.mxu0 %v339
        %402 = vmatpush1.msra.mxu0 %v338
        %403 = vmatprep.subr.mxu0 0.0
        %404 = vmatpush2.msra.mxu0 0.0
        %405 = vmatprep.subr.mxu0 0.0
        %406 = vmatpush2.msra.mxu0 0.0
        %407 = vmatprep.subr.mxu0 0.0
        %408 = vmatpush2.msra.mxu0 0.0
        %409 = vmatprep.subr.mxu0 0.0
        %410 = vmatpush2.msra.mxu0 0.0
        %411 = vmatprep.subr.mxu0 0.0
        %412 = vmatpush2.msra.mxu0 0.0
        %413 = vmatprep.subr.mxu0 0.0
        %414 = vmatpush2.msra.mxu0 0.0
        %415 = vmatprep.subr.mxu0 0.0
        %416 = vmatpush2.msra.mxu0 0.0
        %417 = vmatprep.subr.mxu0 0.0
        %418 = vmatpush2.msra.mxu0 0.0
        %419 = vmatprep.subr.mxu0 0.0
        %420 = vmatpush2.msra.mxu0 0.0
        %421 = vmatprep.subr.mxu0 0.0
        %422 = vmatpush2.msra.mxu0 0.0
        %423 = vmatprep.subr.mxu0 0.0
        %424 = vmatpush2.msra.mxu0 0.0
        %425 = vmatprep.subr.mxu0 0.0
        %426 = vmatpush2.msra.mxu0 0.0
        %427 = vmatprep.subr.mxu0 0.0
        %428 = vmatpush2.msra.mxu0 0.0
        %429 = vmatprep.subr.mxu0 0.0
        %430 = vmatpush2.msra.mxu0 0.0
        %431 = vmatprep.subr.mxu0 0.0
        %432 = vmatpush2.msra.mxu0 0.0
        %433 = vmatprep.subr.mxu0 0.0
        %434 = vmatpush2.msra.mxu0 0.0
        %435 = vmatprep.mubr.f32.mxu0 0.0
        %436 = vmatmul.mubr.f32.gmra.mxu0 %v369
        %v437 = vpop.f32.mrf.mxu0
        %v438 = vadd.f32 %v360, %v437
        %v439 = vpop.f32.mrf.mxu0
        %v440 = vadd.f32 %v364, %v439
        %441 = vdwg.mxu0
        %vm442 = vcmask 64512
        %v444 = vsel %vm442, %v335, 0
        %446 = vmatprep.subr.mxu0 0.0
        %447 = vmatpush1.msra.mxu0 0.0
        %448 = vmatprep.subr.mxu0 0.0
        %449 = vmatpush1.msra.mxu0 0.0
        %450 = vmatprep.subr.mxu0 0.0
        %451 = vmatpush1.msra.mxu0 0.0
        %452 = vmatprep.subr.mxu0 0.0
        %453 = vmatpush1.msra.mxu0 0.0
        %454 = vmatprep.subr.mxu0 0.0
        %455 = vmatpush1.msra.mxu0 0.0
        %456 = vmatprep.subr.mxu0 0.0
        %457 = vmatpush1.msra.mxu0 0.0
        %458 = vmatprep.subr.mxu0 0.0
        %459 = vmatpush1.msra.mxu0 0.0
        %460 = vmatprep.subr.mxu0 0.0
        %461 = vmatpush1.msra.mxu0 0.0
        %462 = vmatprep.subr.mxu0 0.0
        %463 = vmatpush1.msra.mxu0 0.0
        %464 = vmatprep.subr.mxu0 0.0
        %465 = vmatpush1.msra.mxu0 0.0
        %466 = vmatprep.subr.mxu0 0.0
        %467 = vmatpush1.msra.mxu0 0.0
        %468 = vmatprep.subr.mxu0 0.0
        %469 = vmatpush1.msra.mxu0 0.0
        %470 = vmatprep.subr.mxu0 0.0
        %471 = vmatpush1.msra.mxu0 0.0
        %472 = vmatprep.subr.mxu0 0.0
        %473 = vmatpush1.msra.mxu0 0.0
        %474 = vmatprep.subr.mxu0 0.0
        %475 = vmatpush1.msra.mxu0 0.0
        %476 = vmatprep.subr.mxu0 0.0
        %477 = vmatpush1.msra.mxu0 %v438
        %478 = vmatprep.subr.mxu0 0.0
        %479 = vmatpush2.msra.mxu0 0.0
        %480 = vmatprep.subr.mxu0 0.0
        %481 = vmatpush2.msra.mxu0 0.0
        %482 = vmatprep.subr.mxu0 0.0
        %483 = vmatpush2.msra.mxu0 0.0
        %484 = vmatprep.subr.mxu0 0.0
        %485 = vmatpush2.msra.mxu0 0.0
        %486 = vmatprep.subr.mxu0 0.0
        %487 = vmatpush2.msra.mxu0 0.0
        %488 = vmatprep.subr.mxu0 0.0
        %489 = vmatpush2.msra.mxu0 0.0
        %490 = vmatprep.subr.mxu0 0.0
        %491 = vmatpush2.msra.mxu0 0.0
        %492 = vmatprep.subr.mxu0 0.0
        %493 = vmatpush2.msra.mxu0 0.0
        %494 = vmatprep.subr.mxu0 0.0
        %495 = vmatpush2.msra.mxu0 0.0
        %496 = vmatprep.subr.mxu0 0.0
        %497 = vmatpush2.msra.mxu0 0.0
        %498 = vmatprep.subr.mxu0 0.0
        %499 = vmatpush2.msra.mxu0 0.0
        %500 = vmatprep.subr.mxu0 0.0
        %501 = vmatpush2.msra.mxu0 0.0
        %502 = vmatprep.subr.mxu0 0.0
        %503 = vmatpush2.msra.mxu0 0.0
        %504 = vmatprep.subr.mxu0 0.0
        %505 = vmatpush2.msra.mxu0 0.0
        %506 = vmatprep.subr.mxu0 0.0
        %507 = vmatpush2.msra.mxu0 0.0
        %508 = vmatprep.subr.mxu0 0.0
        %509 = vmatpush2.msra.mxu0 0.0
        %510 = vmatprep.mubr.f32.mxu0 0.0
        %511 = vmatmul.mubr.f32.gmra.mxu0 %v444
        %v512 = vpop.f32.mrf.mxu0
        %v513 = vadd.f32 0.0, %v512
        %v514 = vpop.f32.mrf.mxu0
        %515 = vdwg.mxu0
        %517 = vrot.lane.b32.xlu0 %v438, 96
        %v518 = vpop.permute.xlu0 %517
        %v521 = vsel %vm442, %v336, 0
        %523 = vmatprep.subr.mxu0 0.0
        %524 = vmatpush1.msra.mxu0 0.0
        %525 = vmatprep.subr.mxu0 0.0
        %526 = vmatpush1.msra.mxu0 0.0
        %527 = vmatprep.subr.mxu0 0.0
        %528 = vmatpush1.msra.mxu0 0.0
        %529 = vmatprep.subr.mxu0 0.0
        %530 = vmatpush1.msra.mxu0 0.0
        %531 = vmatprep.subr.mxu0 0.0
        %532 = vmatpush1.msra.mxu0 0.0
        %533 = vmatprep.subr.mxu0 0.0
        %534 = vmatpush1.msra.mxu0 0.0
        %535 = vmatprep.subr.mxu0 0.0
        %536 = vmatpush1.msra.mxu0 0.0
        %537 = vmatprep.subr.mxu0 0.0
        %538 = vmatpush1.msra.mxu0 0.0
        %539 = vmatprep.subr.mxu0 0.0
        %540 = vmatpush1.msra.mxu0 0.0
        %541 = vmatprep.subr.mxu0 0.0
        %542 = vmatpush1.msra.mxu0 0.0
        %543 = vmatprep.subr.mxu0 0.0
        %544 = vmatpush1.msra.mxu0 0.0
        %545 = vmatprep.subr.mxu0 0.0
        %546 = vmatpush1.msra.mxu0 0.0
        %547 = vmatprep.subr.mxu0 0.0
        %548 = vmatpush1.msra.mxu0 0.0
        %549 = vmatprep.subr.mxu0 0.0
        %550 = vmatpush1.msra.mxu0 0.0
        %551 = vmatprep.subr.mxu0 0.0
        %552 = vmatpush1.msra.mxu0 0.0
        %553 = vmatprep.subr.mxu0 0.0
        %554 = vmatpush1.msra.mxu0 %v518
        %555 = vmatprep.subr.mxu0 0.0
        %556 = vmatpush2.msra.mxu0 0.0
        %557 = vmatprep.subr.mxu0 0.0
        %558 = vmatpush2.msra.mxu0 0.0
        %559 = vmatprep.subr.mxu0 0.0
        %560 = vmatpush2.msra.mxu0 0.0
        %561 = vmatprep.subr.mxu0 0.0
        %562 = vmatpush2.msra.mxu0 0.0
        %563 = vmatprep.subr.mxu0 0.0
        %564 = vmatpush2.msra.mxu0 0.0
        %565 = vmatprep.subr.mxu0 0.0
        %566 = vmatpush2.msra.mxu0 0.0
        %567 = vmatprep.subr.mxu0 0.0
        %568 = vmatpush2.msra.mxu0 0.0
        %569 = vmatprep.subr.mxu0 0.0
        %570 = vmatpush2.msra.mxu0 0.0
        %571 = vmatprep.subr.mxu0 0.0
        %572 = vmatpush2.msra.mxu0 0.0
        %573 = vmatprep.subr.mxu0 0.0
        %574 = vmatpush2.msra.mxu0 0.0
        %575 = vmatprep.subr.mxu0 0.0
        %576 = vmatpush2.msra.mxu0 0.0
        %577 = vmatprep.subr.mxu0 0.0
        %578 = vmatpush2.msra.mxu0 0.0
        %579 = vmatprep.subr.mxu0 0.0
        %580 = vmatpush2.msra.mxu0 0.0
        %581 = vmatprep.subr.mxu0 0.0
        %582 = vmatpush2.msra.mxu0 0.0
        %583 = vmatprep.subr.mxu0 0.0
        %584 = vmatpush2.msra.mxu0 0.0
        %585 = vmatprep.subr.mxu0 0.0
        %586 = vmatpush2.msra.mxu0 0.0
        %587 = vmatprep.mubr.f32.mxu0 0.0
        %588 = vmatmul.mubr.f32.gmra.mxu0 %v521
        %v589 = vpop.f32.mrf.mxu0
        %v590 = vadd.f32 0.0, %v589
        %v591 = vpop.f32.mrf.mxu0
        %592 = vdwg.mxu0
        %v594 = vsel %vm367, %v590, 0
        %596 = vmatprep.subr.mxu0 0.0
        %597 = vmatpush1.msra.mxu0 0.0
        %598 = vmatprep.subr.mxu0 0.0
        %599 = vmatpush1.msra.mxu0 0.0
        %600 = vmatprep.subr.mxu0 0.0
        %601 = vmatpush1.msra.mxu0 0.0
        %602 = vmatprep.subr.mxu0 0.0
        %603 = vmatpush1.msra.mxu0 0.0
        %604 = vmatprep.subr.mxu0 0.0
        %605 = vmatpush1.msra.mxu0 0.0
        %606 = vmatprep.subr.mxu0 0.0
        %607 = vmatpush1.msra.mxu0 0.0
        %608 = vmatprep.subr.mxu0 0.0
        %609 = vmatpush1.msra.mxu0 0.0
        %610 = vmatprep.subr.mxu0 0.0
        %611 = vmatpush1.msra.mxu0 0.0
        %612 = vmatprep.subr.mxu0 0.0
        %613 = vmatpush1.msra.mxu0 0.0
        %614 = vmatprep.subr.mxu0 0.0
        %615 = vmatpush1.msra.mxu0 0.0
        %616 = vmatprep.subr.mxu0 0.0
        %617 = vmatpush1.msra.mxu0 0.0
        %618 = vmatprep.subr.mxu0 0.0
        %619 = vmatpush1.msra.mxu0 0.0
        %620 = vmatprep.subr.mxu0 0.0
        %621 = vmatpush1.msra.mxu0 %v354
        %622 = vmatprep.subr.mxu0 0.0
        %623 = vmatpush1.msra.mxu0 %v353
        %624 = vmatprep.subr.mxu0 0.0
        %625 = vmatpush1.msra.mxu0 %v352
        %626 = vmatprep.subr.mxu0 0.0
        %627 = vmatpush1.msra.mxu0 %v351
        %628 = vmatprep.subr.mxu0 0.0
        %629 = vmatpush2.msra.mxu0 0.0
        %630 = vmatprep.subr.mxu0 0.0
        %631 = vmatpush2.msra.mxu0 0.0
        %632 = vmatprep.subr.mxu0 0.0
        %633 = vmatpush2.msra.mxu0 0.0
        %634 = vmatprep.subr.mxu0 0.0
        %635 = vmatpush2.msra.mxu0 0.0
        %636 = vmatprep.subr.mxu0 0.0
        %637 = vmatpush2.msra.mxu0 0.0
        %638 = vmatprep.subr.mxu0 0.0
        %639 = vmatpush2.msra.mxu0 0.0
        %640 = vmatprep.subr.mxu0 0.0
        %641 = vmatpush2.msra.mxu0 0.0
        %642 = vmatprep.subr.mxu0 0.0
        %643 = vmatpush2.msra.mxu0 0.0
        %644 = vmatprep.subr.mxu0 0.0
        %645 = vmatpush2.msra.mxu0 0.0
        %646 = vmatprep.subr.mxu0 0.0
        %647 = vmatpush2.msra.mxu0 0.0
        %648 = vmatprep.subr.mxu0 0.0
        %649 = vmatpush2.msra.mxu0 0.0
        %650 = vmatprep.subr.mxu0 0.0
        %651 = vmatpush2.msra.mxu0 0.0
        %652 = vmatprep.subr.mxu0 0.0
        %653 = vmatpush2.msra.mxu0 0.0
        %654 = vmatprep.subr.mxu0 0.0
        %655 = vmatpush2.msra.mxu0 0.0
        %656 = vmatprep.subr.mxu0 0.0
        %657 = vmatpush2.msra.mxu0 0.0
        %658 = vmatprep.subr.mxu0 0.0
        %659 = vmatpush2.msra.mxu0 0.0
        %660 = vmatprep.mubr.f32.mxu0 0.0
        %661 = vmatmul.mubr.f32.gmra.mxu0 %v594
        %v662 = vpop.f32.mrf.mxu0
        %v663 = vadd.f32 0.0, %v662
        %v664 = vpop.f32.mrf.mxu0
        %665 = vdwg.mxu0
        %v667 = vsel %vm367, %v513, 0
        %669 = vmatprep.subr.mxu0 0.0
        %670 = vmatpush1.msra.mxu0 0.0
        %671 = vmatprep.subr.mxu0 0.0
        %672 = vmatpush1.msra.mxu0 0.0
        %673 = vmatprep.subr.mxu0 0.0
        %674 = vmatpush1.msra.mxu0 0.0
        %675 = vmatprep.subr.mxu0 0.0
        %676 = vmatpush1.msra.mxu0 0.0
        %677 = vmatprep.subr.mxu0 0.0
        %678 = vmatpush1.msra.mxu0 0.0
        %679 = vmatprep.subr.mxu0 0.0
        %680 = vmatpush1.msra.mxu0 0.0
        %681 = vmatprep.subr.mxu0 0.0
        %682 = vmatpush1.msra.mxu0 0.0
        %683 = vmatprep.subr.mxu0 0.0
        %684 = vmatpush1.msra.mxu0 0.0
        %685 = vmatprep.subr.mxu0 0.0
        %686 = vmatpush1.msra.mxu0 0.0
        %687 = vmatprep.subr.mxu0 0.0
        %688 = vmatpush1.msra.mxu0 0.0
        %689 = vmatprep.subr.mxu0 0.0
        %690 = vmatpush1.msra.mxu0 0.0
        %691 = vmatprep.subr.mxu0 0.0
        %692 = vmatpush1.msra.mxu0 0.0
        %693 = vmatprep.subr.mxu0 0.0
        %694 = vmatpush1.msra.mxu0 %v350
        %695 = vmatprep.subr.mxu0 0.0
        %696 = vmatpush1.msra.mxu0 %v349
        %697 = vmatprep.subr.mxu0 0.0
        %698 = vmatpush1.msra.mxu0 %v348
        %699 = vmatprep.subr.mxu0 0.0
        %700 = vmatpush1.msra.mxu0 %v347
        %701 = vmatprep.subr.mxu0 0.0
        %702 = vmatpush2.msra.mxu0 0.0
        %703 = vmatprep.subr.mxu0 0.0
        %704 = vmatpush2.msra.mxu0 0.0
        %705 = vmatprep.subr.mxu0 0.0
        %706 = vmatpush2.msra.mxu0 0.0
        %707 = vmatprep.subr.mxu0 0.0
        %708 = vmatpush2.msra.mxu0 0.0
        %709 = vmatprep.subr.mxu0 0.0
        %710 = vmatpush2.msra.mxu0 0.0
        %711 = vmatprep.subr.mxu0 0.0
        %712 = vmatpush2.msra.mxu0 0.0
        %713 = vmatprep.subr.mxu0 0.0
        %714 = vmatpush2.msra.mxu0 0.0
        %715 = vmatprep.subr.mxu0 0.0
        %716 = vmatpush2.msra.mxu0 0.0
        %717 = vmatprep.subr.mxu0 0.0
        %718 = vmatpush2.msra.mxu0 0.0
        %719 = vmatprep.subr.mxu0 0.0
        %720 = vmatpush2.msra.mxu0 0.0
        %721 = vmatprep.subr.mxu0 0.0
        %722 = vmatpush2.msra.mxu0 0.0
        %723 = vmatprep.subr.mxu0 0.0
        %724 = vmatpush2.msra.mxu0 0.0
        %725 = vmatprep.subr.mxu0 0.0
        %726 = vmatpush2.msra.mxu0 0.0
        %727 = vmatprep.subr.mxu0 0.0
        %728 = vmatpush2.msra.mxu0 0.0
        %729 = vmatprep.subr.mxu0 0.0
        %730 = vmatpush2.msra.mxu0 0.0
        %731 = vmatprep.subr.mxu0 0.0
        %732 = vmatpush2.msra.mxu0 0.0
        %733 = vmatprep.mubr.f32.mxu0 0.0
        %734 = vmatmul.mubr.f32.gmra.mxu0 %v667
        %v735 = vpop.f32.mrf.mxu0
        %v736 = vadd.f32 %v663, %v735
        %v737 = vpop.f32.mrf.mxu0
        %738 = vdwg.mxu0
        %v740 = vlaneseq
        %v741 = vshrl.u32 %v740, 7
        %v742 = vsub.s32 0, %v741
        %v743 = vrot.slane %v355, %v742
        %v745 = vadd.f32 %v736, %v743
        %746 = vrot.lane.b32.xlu0 %v438, 64
        %v747 = vpop.permute.xlu0 %746
        %v749 = vadd.f32 %v745, %v747
        %v750 = vxor.u32 %v749, 2147483648
        %v751 = vmul.f32 %v750, 1.442695
        %v752 = vpow.pop %v751
        %v753 = vadd.f32 %v752, 1.0
        %v754 = vrcp.pop %v753
        %v755 = vmul.f32 1.0, %v754
        %v756 = vmul.f32 %v755, %v440
        %758 = vrot.lane.b32.xlu0 %v756, 64
        %v759 = vpop.permute.xlu0 %758
        %v761 = vadd.f32 %v745, %v759
        %v762 = vtanh.pop %v761
        %v763 = vsub.f32 1.0, %v755
        %764 = vrot.lane.b32.xlu0 %v337, 32
        %v765 = vpop.permute.xlu0 %764
        %v767 = vmul.f32 %v763, %v765
        %769 = vrot.lane.b32.xlu0 %v762, 96
        %v770 = vpop.permute.xlu0 %769
        %v772 = vmul.f32 %v755, %v770
        %v773 = vadd.f32 %v767, %v772
        %775 = vrot.lane.b32.xlu0 %v773, 96
        %v776 = vpop.permute.xlu0 %775
        %778 = vst.msk [vmem:[%s322] sm:$0xff] %vm367, %v776
        %s779 = sand.u32 %s213, 1
        %s780 = scalar_lea.sflag [#allocation3], %s779
        %s781 = sand.u32 %s213, 1
        %s782 = smul.addr %s781, 8
        %s783 = scalar_lea.vmem [#allocation2], %s782
        // Predicated region
        $region53: #{gnn_forward.1} parent=51 // pred_check
          %p784 = pneg %p223
        $region54: #{gnn_forward.1} parent=51 // pred_check_branch
          %786 = sbr.rel (%p784) target = $region56
        $region55: #{gnn_forward.1} parent=51 // pred_region
          %s788 = ssub.s32 128, 128
          %789 = vsyncadd %s780, %s788
          %s790 = smul.addr %s22, 128
          %s791 = scalar_lea.hbm %s8, %s790
          %s793 = sshll.u32 %s783, 4
          %s794 = int_to_ptr.vmem [resolvable:$true] %s793
          %796 = dma.vmem_to_hbm [thread:$0]  %s794, 128, %s791, %s780
        $region56: #{gnn_forward.1} parent=51 // pred_fallthru
          _
      $region52: #{gnn_forward.1} parent=5 // pred_fallthru
        _
      %p797 = scmp.le.s32.totalorder 2, %s17
      // Predicated region
      $region57: #{gnn_forward.1} parent=5 // pred_check
        %p798 = pneg %p797
      $region58: #{gnn_forward.1} parent=5 // pred_check_branch
        %800 = sbr.rel (%p798) target = $region60
      $region59: #{gnn_forward.1} parent=5 // pred_region
        %s801 = ssub.s32 %s17, 2
        // Predicated region
        $region61: #{gnn_forward.1} parent=59 // pred_check
          %p802 = pneg %p229
        $region62: #{gnn_forward.1} parent=59 // pred_check_branch
          %804 = sbr.rel (%p802) target = $region64
        $region63: #{gnn_forward.1} parent=59 // pred_region
          %s805 = sand.u32 %s214, 1
          %s806 = scalar_lea.sflag [#allocation3], %s805
          %s807 = sand.u32 %s214, 1
          %s808 = smul.addr %s807, 8
          %s809 = scalar_lea.vmem [#allocation2], %s808
          %810 = dma.done %s806, 128
        $region64: #{gnn_forward.1} parent=59 // pred_fallthru
          _
      $region60: #{gnn_forward.1} parent=5 // pred_fallthru
        _
    $region6: #{gnn_forward.1} parent=1 // loop_footer
      %s21 = sadd.s32 1, %s17
    $region7: #{gnn_forward.1} parent=1 // loop_footer_branch
      %16 = sbr.rel target = $region3
    $region8: #{gnn_forward.1} parent=1 // loop_exit
      _
    %811 = vsyncpa [#allocation3], 1
    %s812 = scalar_lea.sflag [#allocation3], 1
    %813 = vsyncpa %s812, 1

</llo_original>
